<compile_context>
chip_gen: v6e
topology: v6e:2x2x1
jax: 0.10.0
libtpu: 0.0.40
codegen_flags: <defaults>
</compile_context>

<pallas_src>
import jax
import jax.numpy as jnp
from jax import lax
from jax.experimental import pallas as pl
from jax.experimental.pallas import tpu as pltpu


def gaussian_kernel(x_ref, wm_ref, wl_ref, bm_ref, bl_ref, eps_ref,
                    z_ref, mean_ref, logvar_ref):
    # x_ref:   [TM, in_dim]
    # wm_ref:  [out_dim, in_dim]   (mean half of the PyTorch weight)
    # wl_ref:  [out_dim, in_dim]   (logvar half)
    # bm_ref:  [1, out_dim]
    # bl_ref:  [1, out_dim]
    # eps_ref: [TM, out_dim]
    x = x_ref[...]

    # x @ W^T on the MXU: contract the last dim of both operands (no transpose
    # materialized anywhere), accumulate in f32.
    dims = (((1,), (1,)), ((), ()))
    mean = lax.dot_general(x, wm_ref[...], dims,
                           preferred_element_type=jnp.float32) + bm_ref[...]
    logvar = lax.dot_general(x, wl_ref[...], dims,
                             preferred_element_type=jnp.float32) + bl_ref[...]

    # Reparameterization: z = mean + eps * exp(0.5 * logvar)
    std = jnp.exp(0.5 * logvar)
    z = mean + eps_ref[...].astype(jnp.float32) * std

    z_ref[...] = z.astype(z_ref.dtype)
    mean_ref[...] = mean.astype(mean_ref.dtype)
    logvar_ref[...] = logvar.astype(logvar_ref.dtype)


def gaussian_forward(x, weight, bias, eps, *, block_m=512, matmul_dtype=None):
    """Fused Linear + split + reparameterization.

    x:      [B, in_dim]
    weight: [2*out_dim, in_dim]   (PyTorch nn.Linear layout)
    bias:   [2*out_dim]
    eps:    [B, out_dim]          (standard-normal noise)
    Returns (z, mean, logvar), each [B, out_dim] float32.
    """
    B, in_dim = x.shape
    two_out = weight.shape[0]
    out_dim = two_out // 2

    # Split the weight/bias along the leading (non-lane) dim: cheap contiguous
    # slices, and both kernel outputs start at lane 0 (128-lane aligned).
    w_mean = weight[:out_dim]                     # [out_dim, in_dim]
    w_logvar = weight[out_dim:]                   # [out_dim, in_dim]
    b_mean = bias[:out_dim].reshape(1, out_dim)   # [1, out_dim]
    b_logvar = bias[out_dim:].reshape(1, out_dim)

    if matmul_dtype is not None:
        # Optional bf16 (v6e/v7x) operand path; accumulation stays f32.
        x = x.astype(matmul_dtype)
        w_mean = w_mean.astype(matmul_dtype)
        w_logvar = w_logvar.astype(matmul_dtype)

    # Batch tile: whole batch if small, otherwise a sublane-aligned tile.
    if B <= block_m:
        tm = B
    else:
        tm = max(8, (block_m // 8) * 8)
    grid = (pl.cdiv(B, tm),)

    x_spec = pl.BlockSpec((tm, in_dim), lambda i: (i, 0))
    row_spec = pl.BlockSpec((tm, out_dim), lambda i: (i, 0))
    w_spec = pl.BlockSpec((out_dim, in_dim), lambda i: (0, 0))   # VMEM-resident
    b_spec = pl.BlockSpec((1, out_dim), lambda i: (0, 0))        # VMEM-resident

    out_shape = tuple(
        jax.ShapeDtypeStruct((B, out_dim), jnp.float32) for _ in range(3)
    )

    return pl.pallas_call(
        gaussian_kernel,
        out_shape=out_shape,
        grid=grid,
        in_specs=[x_spec, w_spec, w_spec, b_spec, b_spec, row_spec],
        out_specs=(row_spec, row_spec, row_spec),
        compiler_params=pltpu.CompilerParams(
            dimension_semantics=("parallel",),      # megacore sharding on v7x
            vmem_limit_bytes=48 * 1024 * 1024,      # headroom for large in_dim tiles
        ),
    )(x, w_mean, w_logvar, b_mean, b_logvar, eps)


if __name__ == "__main__":
    key = jax.random.PRNGKey(0)
    k_x, k_w, k_b, k_eps = jax.random.split(key, 4)

    # Small shapes consistent with the module: batch=2, in_dim=32, out_dim=16.
    B, in_dim, out_dim = 2, 32, 16
    x = jax.random.normal(k_x, (B, in_dim), dtype=jnp.float32)
    # Deterministic "Linear" params (PyTorch layout: [out_features, in_features]).
    weight = jax.random.normal(k_w, (2 * out_dim, in_dim), dtype=jnp.float32) * 0.1
    bias = jax.random.normal(k_b, (2 * out_dim,), dtype=jnp.float32) * 0.1
    # eps ~ N(0,1), same role as torch.randn_like(mean).
    eps = jax.random.normal(k_eps, (B, out_dim), dtype=jnp.float32)

    z, mean, logvar = gaussian_forward(x, weight, bias, eps)
    jax.block_until_ready((z, mean, logvar))

    # Pure-JAX reference.
    def ref(xv, epsv):
        logits = xv @ weight.T + bias
        m, lv = logits[:, :out_dim], logits[:, out_dim:]
        return m + epsv * jnp.exp(0.5 * lv), m, lv

    z_r, m_r, lv_r = ref(x, eps)
    assert jnp.allclose(mean, m_r, atol=1e-5)
    assert jnp.allclose(logvar, lv_r, atol=1e-5)
    assert jnp.allclose(z, z_r, atol=1e-5)

    # Exercise the tiled, multi-grid-step (pipelined) path with a small block.
    B2 = 32
    x2 = jax.random.normal(k_x, (B2, in_dim), dtype=jnp.float32)
    eps2 = jax.random.normal(k_eps, (B2, out_dim), dtype=jnp.float32)
    z2, m2, lv2 = gaussian_forward(x2, weight, bias, eps2, block_m=8)
    jax.block_until_ready((z2, m2, lv2))
    z2_r, m2_r, lv2_r = ref(x2, eps2)
    assert jnp.allclose(m2, m2_r, atol=1e-5)
    assert jnp.allclose(lv2, lv2_r, atol=1e-5)
    assert jnp.allclose(z2, z2_r, atol=1e-5)

    print("KERNEL_OK")
</pallas_src>

<mosaic_0001>
module attributes {stable_mosaic.version = 11 : i64} {
  func.func @gaussian_kernel(%arg0: i32, %arg1: memref<2x32xf32, #tpu.memory_space<vmem>>, %arg2: memref<16x32xf32, #tpu.memory_space<vmem>>, %arg3: memref<16x32xf32, #tpu.memory_space<vmem>>, %arg4: memref<1x16xf32, #tpu.memory_space<vmem>>, %arg5: memref<1x16xf32, #tpu.memory_space<vmem>>, %arg6: memref<2x16xf32, #tpu.memory_space<vmem>>, %arg7: memref<2x16xf32, #tpu.memory_space<vmem>>, %arg8: memref<2x16xf32, #tpu.memory_space<vmem>>, %arg9: memref<2x16xf32, #tpu.memory_space<vmem>>) attributes {dimension_semantics = [#tpu.dimension_semantics<parallel>], iteration_bounds = array<i64: 1>, scalar_prefetch = 0 : i64, scratch_operands = 0 : i64, tpu.core_type = #tpu.core_type<tc>, window_params = [{transform_indices = @transform_0, window_bounds = array<i64: 2, 32>}, {pipeline_mode = #tpu.pipeline_mode<synchronous>, transform_indices = @transform_1, window_bounds = array<i64: 16, 32>}, {pipeline_mode = #tpu.pipeline_mode<synchronous>, transform_indices = @transform_2, window_bounds = array<i64: 16, 32>}, {pipeline_mode = #tpu.pipeline_mode<synchronous>, transform_indices = @transform_3, window_bounds = array<i64: 1, 16>}, {pipeline_mode = #tpu.pipeline_mode<synchronous>, transform_indices = @transform_4, window_bounds = array<i64: 1, 16>}, {transform_indices = @transform_5, window_bounds = array<i64: 2, 16>}, {transform_indices = @transform_6, window_bounds = array<i64: 2, 16>}, {transform_indices = @transform_7, window_bounds = array<i64: 2, 16>}, {transform_indices = @transform_8, window_bounds = array<i64: 2, 16>}]} {
    %c0 = arith.constant 0 : index
    %c0_0 = arith.constant 0 : index
    %0 = vector.load %arg1[%c0, %c0_0] : memref<2x32xf32, #tpu.memory_space<vmem>>, vector<2x32xf32>
    %c0_1 = arith.constant 0 : index
    %c0_2 = arith.constant 0 : index
    %1 = vector.load %arg2[%c0_1, %c0_2] : memref<16x32xf32, #tpu.memory_space<vmem>>, vector<16x32xf32>
    %cst = arith.constant dense<0.000000e+00> : vector<2x16xf32>
    %2 = tpu.matmul %0, %1, %cst {dimension_numbers = #tpu.dot_dimension_numbers<[1], [1], [0], [0], [0, 0, 1, 0], [], []>} : vector<2x32xf32>, vector<16x32xf32>, vector<2x16xf32> -> vector<2x16xf32>
    %c0_3 = arith.constant 0 : index
    %c0_4 = arith.constant 0 : index
    %3 = vector.load %arg4[%c0_3, %c0_4] : memref<1x16xf32, #tpu.memory_space<vmem>>, vector<1x16xf32>
    %4 = vector.broadcast %3 : vector<1x16xf32> to vector<2x16xf32>
    %5 = arith.addf %2, %4 : vector<2x16xf32>
    %c0_5 = arith.constant 0 : index
    %c0_6 = arith.constant 0 : index
    %6 = vector.load %arg3[%c0_5, %c0_6] : memref<16x32xf32, #tpu.memory_space<vmem>>, vector<16x32xf32>
    %cst_7 = arith.constant dense<0.000000e+00> : vector<2x16xf32>
    %7 = tpu.matmul %0, %6, %cst_7 {dimension_numbers = #tpu.dot_dimension_numbers<[1], [1], [0], [0], [0, 0, 1, 0], [], []>} : vector<2x32xf32>, vector<16x32xf32>, vector<2x16xf32> -> vector<2x16xf32>
    %c0_8 = arith.constant 0 : index
    %c0_9 = arith.constant 0 : index
    %8 = vector.load %arg5[%c0_8, %c0_9] : memref<1x16xf32, #tpu.memory_space<vmem>>, vector<1x16xf32>
    %9 = vector.broadcast %8 : vector<1x16xf32> to vector<2x16xf32>
    %10 = arith.addf %7, %9 : vector<2x16xf32>
    %cst_10 = arith.constant 5.000000e-01 : f32
    %11 = vector.broadcast %cst_10 : f32 to vector<2x16xf32>
    %12 = arith.mulf %11, %10 : vector<2x16xf32>
    %13 = math.exp %12 : vector<2x16xf32>
    %c0_11 = arith.constant 0 : index
    %c0_12 = arith.constant 0 : index
    %14 = vector.load %arg6[%c0_11, %c0_12] : memref<2x16xf32, #tpu.memory_space<vmem>>, vector<2x16xf32>
    %15 = arith.mulf %14, %13 : vector<2x16xf32>
    %16 = arith.addf %5, %15 : vector<2x16xf32>
    %c0_13 = arith.constant 0 : index
    %c0_14 = arith.constant 0 : index
    %17 = vector.load %arg7[%c0_13, %c0_14] : memref<2x16xf32, #tpu.memory_space<vmem>>, vector<2x16xf32>
    tpu.vector_store %arg7[%c0_13, %c0_14], %16 {strides = array<i32>} : memref<2x16xf32, #tpu.memory_space<vmem>>, vector<2x16xf32>,
    %c0_15 = arith.constant 0 : index
    %c0_16 = arith.constant 0 : index
    %18 = vector.load %arg8[%c0_15, %c0_16] : memref<2x16xf32, #tpu.memory_space<vmem>>, vector<2x16xf32>
    tpu.vector_store %arg8[%c0_15, %c0_16], %5 {strides = array<i32>} : memref<2x16xf32, #tpu.memory_space<vmem>>, vector<2x16xf32>,
    %c0_17 = arith.constant 0 : index
    %c0_18 = arith.constant 0 : index
    %19 = vector.load %arg9[%c0_17, %c0_18] : memref<2x16xf32, #tpu.memory_space<vmem>>, vector<2x16xf32>
    tpu.vector_store %arg9[%c0_17, %c0_18], %10 {strides = array<i32>} : memref<2x16xf32, #tpu.memory_space<vmem>>, vector<2x16xf32>,
    return
  }
  func.func @transform_0(%arg0: i32) -> (i32, i32) {
    %c0_i32 = arith.constant 0 : i32
    %c0_i32_0 = arith.constant 0 : i32
    return %arg0, %c0_i32 : i32, i32
  }
  func.func @transform_1(%arg0: i32) -> (i32, i32) {
    %c0_i32 = arith.constant 0 : i32
    %c0_i32_0 = arith.constant 0 : i32
    %c0_i32_1 = arith.constant 0 : i32
    return %c0_i32, %c0_i32_0 : i32, i32
  }
  func.func @transform_2(%arg0: i32) -> (i32, i32) {
    %c0_i32 = arith.constant 0 : i32
    %c0_i32_0 = arith.constant 0 : i32
    %c0_i32_1 = arith.constant 0 : i32
    return %c0_i32, %c0_i32_0 : i32, i32
  }
  func.func @transform_3(%arg0: i32) -> (i32, i32) {
    %c0_i32 = arith.constant 0 : i32
    %c0_i32_0 = arith.constant 0 : i32
    %c0_i32_1 = arith.constant 0 : i32
    return %c0_i32, %c0_i32_0 : i32, i32
  }
  func.func @transform_4(%arg0: i32) -> (i32, i32) {
    %c0_i32 = arith.constant 0 : i32
    %c0_i32_0 = arith.constant 0 : i32
    %c0_i32_1 = arith.constant 0 : i32
    return %c0_i32, %c0_i32_0 : i32, i32
  }
  func.func @transform_5(%arg0: i32) -> (i32, i32) {
    %c0_i32 = arith.constant 0 : i32
    %c0_i32_0 = arith.constant 0 : i32
    return %arg0, %c0_i32 : i32, i32
  }
  func.func @transform_6(%arg0: i32) -> (i32, i32) {
    %c0_i32 = arith.constant 0 : i32
    %c0_i32_0 = arith.constant 0 : i32
    return %arg0, %c0_i32 : i32, i32
  }
  func.func @transform_7(%arg0: i32) -> (i32, i32) {
    %c0_i32 = arith.constant 0 : i32
    %c0_i32_0 = arith.constant 0 : i32
    return %arg0, %c0_i32 : i32, i32
  }
  func.func @transform_8(%arg0: i32) -> (i32, i32) {
    %c0_i32 = arith.constant 0 : i32
    %c0_i32_0 = arith.constant 0 : i32
    return %arg0, %c0_i32 : i32, i32
  }
}

</mosaic_0001>

<llo_original>
// kernel: tpu_custom_call.1
$region0: #{tpu_custom_call.1}
  #allocation0 [shape = 'u32[]', space=smem, size = 0x4, offset = 0x4, fixed_abs, tag = 'smem constant byte address 0x4 - core index']
  #allocation1 [shape = 'u32[144,128]{1,0:T(1,128)}', space=vmem, size = 0x12000, scoped, tag = 'internal scratch']
  %s0 = inlined_call_operand.hbm [shape: f32[2,32], index: 0, kind: input, shape index: {}]
  %s1 = inlined_call_operand.hbm [shape: f32[16,32], index: 1, kind: input, shape index: {}]
  %s2 = inlined_call_operand.hbm [shape: f32[16,32], index: 2, kind: input, shape index: {}]
  %s3 = inlined_call_operand.vmem [shape: f32[1,16], index: 3, kind: input, shape index: {}]
  %s4 = inlined_call_operand.vmem [shape: f32[1,16], index: 4, kind: input, shape index: {}]
  %s5 = inlined_call_operand.vmem [shape: f32[2,16], index: 5, kind: input, shape index: {}]
  %s6 = inlined_call_operand.hbm [shape: f32[2,16], index: 6, kind: output, shape index: {0}]
  %s7 = inlined_call_operand.hbm [shape: f32[2,16], index: 7, kind: output, shape index: {1}]
  %s8 = inlined_call_operand.hbm [shape: f32[2,16], index: 8, kind: output, shape index: {2}]
  %9 = xla_tuple %s6, %s7, %s8
  %s10 = sld [smem:[#allocation0]]
  $region62: #{tpu_custom_call.1} parent=0
    _
  %s12 = ssub.s32 1, %s10
  %s13 = scalar_select 0, %s12, %s10
  $region1: #{tpu_custom_call.1} parent=0
    #allocation2 [shape = 'u8[1024]{0}', space=vmem, size = 0x400, scoped, tag = 'input window, operand 0, single buffered']
    #allocation3 [shape = 's32[1]{0}', space=sflag, size = 0x4, scoped, tag = 'scoped memory for tpu_custom_call.1']
    #allocation4 [shape = 's32[1]{0}', space=sflag, size = 0x4, scoped, tag = 'scoped memory for tpu_custom_call.1']
    #allocation5 [shape = 'u8[8192]{0}', space=vmem, size = 0x2000, scoped, tag = 'input window, operand 1, single buffered']
    #allocation6 [shape = 's32[1]{0}', space=sflag, size = 0x4, scoped, tag = 'scoped memory for tpu_custom_call.1']
    #allocation7 [shape = 'u8[8192]{0}', space=vmem, size = 0x2000, scoped, tag = 'input window, operand 2, single buffered']
    #allocation8 [shape = 'u8[1024]{0}', space=vmem, size = 0x400, scoped, tag = 'output window, operand 0, single buffered']
    #allocation9 [shape = 'u8[1024]{0}', space=vmem, size = 0x400, scoped, tag = 'output window, operand 1, single buffered']
    #allocation10 [shape = 's32[1]{0}', space=sflag, size = 0x4, scoped, tag = 'scoped memory for tpu_custom_call.1']
    #allocation11 [shape = 'u8[1024]{0}', space=vmem, size = 0x400, scoped, tag = 'output window, operand 2, single buffered']
    %14 = vsyncpa [#allocation3], 0
    %15 = vsyncpa [#allocation6], 0
    %16 = vsyncpa [#allocation4], 0
    %17 = vsyncpa [#allocation10], 0
    // Predicated region
    $region2: #{tpu_custom_call.1} parent=1 // pred_check
      _
    $region3: #{tpu_custom_call.1} parent=1 // pred_check_branch
      %19 = sbr.rel (0) target = $region5
    $region4: #{tpu_custom_call.1} parent=1 // pred_region
      %s21 = ssub.s32 32, 32
      %22 = vsyncadd [#allocation3], %s21
      %s24 = sshll.u32 [#allocation2], 4
      %s25 = int_to_ptr.vmem [resolvable:$true] %s24
      %27 = dma.hbm_to_vmem [thread:$0]  %s0, 32, %s25, [#allocation3]
    $region5: #{tpu_custom_call.1} parent=1 // pred_fallthru
      _
    // Predicated region
    $region6: #{tpu_custom_call.1} parent=1 // pred_check
      _
    $region7: #{tpu_custom_call.1} parent=1 // pred_check_branch
      %29 = sbr.rel (0) target = $region9
    $region8: #{tpu_custom_call.1} parent=1 // pred_region
      %s31 = ssub.s32 256, 256
      %32 = vsyncadd [#allocation6], %s31
      %s33 = sshll.u32 [#allocation5], 4
      %s34 = int_to_ptr.vmem [resolvable:$true] %s33
      %39 = dma.hbm_to_vmem [thread:$0]  %s1, 256, %s34, [#allocation6], 128, 128, 8
    $region9: #{tpu_custom_call.1} parent=1 // pred_fallthru
      _
    // Predicated region
    $region10: #{tpu_custom_call.1} parent=1 // pred_check
      _
    $region11: #{tpu_custom_call.1} parent=1 // pred_check_branch
      %41 = sbr.rel (0) target = $region13
    $region12: #{tpu_custom_call.1} parent=1 // pred_region
      %s43 = ssub.s32 256, 256
      %44 = vsyncadd [#allocation6], %s43
      %s45 = sshll.u32 [#allocation7], 4
      %s46 = int_to_ptr.vmem [resolvable:$true] %s45
      %51 = dma.hbm_to_vmem [thread:$0]  %s2, 256, %s46, [#allocation6], 128, 128, 8
    $region13: #{tpu_custom_call.1} parent=1 // pred_fallthru
      _
    // Predicated region
    $region14: #{tpu_custom_call.1} parent=1 // pred_check
      _
    $region15: #{tpu_custom_call.1} parent=1 // pred_check_branch
      %53 = sbr.rel (0) target = $region17
    $region16: #{tpu_custom_call.1} parent=1 // pred_region
      _
    $region17: #{tpu_custom_call.1} parent=1 // pred_fallthru
      _
    // Predicated region
    $region18: #{tpu_custom_call.1} parent=1 // pred_check
      _
    $region19: #{tpu_custom_call.1} parent=1 // pred_check_branch
      %55 = sbr.rel (0) target = $region21
    $region20: #{tpu_custom_call.1} parent=1 // pred_region
      _
    $region21: #{tpu_custom_call.1} parent=1 // pred_fallthru
      _
    // Predicated region
    $region22: #{tpu_custom_call.1} parent=1 // pred_check
      _
    $region23: #{tpu_custom_call.1} parent=1 // pred_check_branch
      %57 = sbr.rel (0) target = $region25
    $region24: #{tpu_custom_call.1} parent=1 // pred_region
      _
    $region25: #{tpu_custom_call.1} parent=1 // pred_fallthru
      _
    // Predicated region
    $region26: #{tpu_custom_call.1} parent=1 // pred_check
      _
    $region27: #{tpu_custom_call.1} parent=1 // pred_check_branch
      %59 = sbr.rel (0) target = $region29
    $region28: #{tpu_custom_call.1} parent=1 // pred_region
      %60 = dma.done [#allocation3], 32
    $region29: #{tpu_custom_call.1} parent=1 // pred_fallthru
      _
    // Predicated region
    $region30: #{tpu_custom_call.1} parent=1 // pred_check
      _
    $region31: #{tpu_custom_call.1} parent=1 // pred_check_branch
      %62 = sbr.rel (0) target = $region33
    $region32: #{tpu_custom_call.1} parent=1 // pred_region
      %63 = dma.done [#allocation6], 256
    $region33: #{tpu_custom_call.1} parent=1 // pred_fallthru
      _
    // Predicated region
    $region34: #{tpu_custom_call.1} parent=1 // pred_check
      _
    $region35: #{tpu_custom_call.1} parent=1 // pred_check_branch
      %65 = sbr.rel (0) target = $region37
    $region36: #{tpu_custom_call.1} parent=1 // pred_region
      %66 = dma.done [#allocation6], 256
    $region37: #{tpu_custom_call.1} parent=1 // pred_fallthru
      _
    %v67 = vld [vmem:[#allocation2] sm:$0x3]
    %v68 = vld [vmem:[#allocation5] sm:$0xff]
    %v69 = vld [vmem:[#allocation5 + $0x8] sm:$0xff]
    %v70 = vld [vmem:[%s3] sm:$0x1]
    %v72 = vlaneseq
    %v73 = vshrl.u32 %v72, 7
    %v74 = vsub.s32 0, %v73
    %v75 = vrot.slane %v70, %v74
    %vm77 = vcmask 261120
    %v79 = vsel %vm77, %v67, 0
    %v82 = vsel %vm77, %v68, 0
    %v85 = vsel %vm77, %v69, 0
    %87 = vmatprep.subr.mxu0 0.0
    %88 = vmatpush1.xpose.msra.mxu0 0.0
    %89 = vmatprep.subr.mxu0 0.0
    %90 = vmatpush1.xpose.msra.mxu0 0.0
    %91 = vmatprep.subr.mxu0 0.0
    %92 = vmatpush1.xpose.msra.mxu0 0.0
    %93 = vmatprep.subr.mxu0 0.0
    %94 = vmatpush1.xpose.msra.mxu0 0.0
    %95 = vmatprep.subr.mxu0 0.0
    %96 = vmatpush1.xpose.msra.mxu0 0.0
    %97 = vmatprep.subr.mxu0 0.0
    %98 = vmatpush1.xpose.msra.mxu0 0.0
    %99 = vmatprep.subr.mxu0 0.0
    %100 = vmatpush1.xpose.msra.mxu0 0.0
    %101 = vmatprep.subr.mxu0 0.0
    %102 = vmatpush1.xpose.msra.mxu0 0.0
    %103 = vmatprep.subr.mxu0 0.0
    %104 = vmatpush1.xpose.msra.mxu0 0.0
    %105 = vmatprep.subr.mxu0 0.0
    %106 = vmatpush1.xpose.msra.mxu0 0.0
    %107 = vmatprep.subr.mxu0 0.0
    %108 = vmatpush1.xpose.msra.mxu0 0.0
    %109 = vmatprep.subr.mxu0 0.0
    %110 = vmatpush1.xpose.msra.mxu0 0.0
    %111 = vmatprep.subr.mxu0 0.0
    %112 = vmatpush1.xpose.msra.mxu0 0.0
    %113 = vmatprep.subr.mxu0 0.0
    %114 = vmatpush1.xpose.msra.mxu0 0.0
    %115 = vmatprep.subr.mxu0 0.0
    %116 = vmatpush1.xpose.msra.mxu0 %v85
    %117 = vmatprep.subr.mxu0 0.0
    %118 = vmatpush1.xpose.msra.mxu0 %v82
    %119 = vmatprep.subr.mxu0 0.0
    %120 = vmatpush2.xpose.msra.mxu0 0.0
    %121 = vmatprep.subr.mxu0 0.0
    %122 = vmatpush2.xpose.msra.mxu0 0.0
    %123 = vmatprep.subr.mxu0 0.0
    %124 = vmatpush2.xpose.msra.mxu0 0.0
    %125 = vmatprep.subr.mxu0 0.0
    %126 = vmatpush2.xpose.msra.mxu0 0.0
    %127 = vmatprep.subr.mxu0 0.0
    %128 = vmatpush2.xpose.msra.mxu0 0.0
    %129 = vmatprep.subr.mxu0 0.0
    %130 = vmatpush2.xpose.msra.mxu0 0.0
    %131 = vmatprep.subr.mxu0 0.0
    %132 = vmatpush2.xpose.msra.mxu0 0.0
    %133 = vmatprep.subr.mxu0 0.0
    %134 = vmatpush2.xpose.msra.mxu0 0.0
    %135 = vmatprep.subr.mxu0 0.0
    %136 = vmatpush2.xpose.msra.mxu0 0.0
    %137 = vmatprep.subr.mxu0 0.0
    %138 = vmatpush2.xpose.msra.mxu0 0.0
    %139 = vmatprep.subr.mxu0 0.0
    %140 = vmatpush2.xpose.msra.mxu0 0.0
    %141 = vmatprep.subr.mxu0 0.0
    %142 = vmatpush2.xpose.msra.mxu0 0.0
    %143 = vmatprep.subr.mxu0 0.0
    %144 = vmatpush2.xpose.msra.mxu0 0.0
    %145 = vmatprep.subr.mxu0 0.0
    %146 = vmatpush2.xpose.msra.mxu0 0.0
    %147 = vmatprep.subr.mxu0 0.0
    %148 = vmatpush2.xpose.msra.mxu0 0.0
    %149 = vmatprep.subr.mxu0 0.0
    %150 = vmatpush2.xpose.msra.mxu0 0.0
    %151 = vmatprep.mubr.f32.mxu0 0.0
    %152 = vmatmul.mubr.f32.gmra.mxu0 %v79
    %v153 = vpop.f32.mrf.mxu0
    %v154 = vadd.f32 %v75, %v153
    %v155 = vpop.f32.mrf.mxu0
    %156 = vdwg.mxu0
    %v157 = vld [vmem:[#allocation7] sm:$0xff]
    %v158 = vld [vmem:[#allocation7 + $0x8] sm:$0xff]
    %v159 = vld [vmem:[%s4] sm:$0x1]
    %v161 = vlaneseq
    %v162 = vshrl.u32 %v161, 7
    %v163 = vsub.s32 0, %v162
    %v164 = vrot.slane %v159, %v163
    %v167 = vsel %vm77, %v157, 0
    %v170 = vsel %vm77, %v158, 0
    %172 = vmatprep.subr.mxu0 0.0
    %173 = vmatpush1.xpose.msra.mxu0 0.0
    %174 = vmatprep.subr.mxu0 0.0
    %175 = vmatpush1.xpose.msra.mxu0 0.0
    %176 = vmatprep.subr.mxu0 0.0
    %177 = vmatpush1.xpose.msra.mxu0 0.0
    %178 = vmatprep.subr.mxu0 0.0
    %179 = vmatpush1.xpose.msra.mxu0 0.0
    %180 = vmatprep.subr.mxu0 0.0
    %181 = vmatpush1.xpose.msra.mxu0 0.0
    %182 = vmatprep.subr.mxu0 0.0
    %183 = vmatpush1.xpose.msra.mxu0 0.0
    %184 = vmatprep.subr.mxu0 0.0
    %185 = vmatpush1.xpose.msra.mxu0 0.0
    %186 = vmatprep.subr.mxu0 0.0
    %187 = vmatpush1.xpose.msra.mxu0 0.0
    %188 = vmatprep.subr.mxu0 0.0
    %189 = vmatpush1.xpose.msra.mxu0 0.0
    %190 = vmatprep.subr.mxu0 0.0
    %191 = vmatpush1.xpose.msra.mxu0 0.0
    %192 = vmatprep.subr.mxu0 0.0
    %193 = vmatpush1.xpose.msra.mxu0 0.0
    %194 = vmatprep.subr.mxu0 0.0
    %195 = vmatpush1.xpose.msra.mxu0 0.0
    %196 = vmatprep.subr.mxu0 0.0
    %197 = vmatpush1.xpose.msra.mxu0 0.0
    %198 = vmatprep.subr.mxu0 0.0
    %199 = vmatpush1.xpose.msra.mxu0 0.0
    %200 = vmatprep.subr.mxu0 0.0
    %201 = vmatpush1.xpose.msra.mxu0 %v170
    %202 = vmatprep.subr.mxu0 0.0
    %203 = vmatpush1.xpose.msra.mxu0 %v167
    %204 = vmatprep.subr.mxu0 0.0
    %205 = vmatpush2.xpose.msra.mxu0 0.0
    %206 = vmatprep.subr.mxu0 0.0
    %207 = vmatpush2.xpose.msra.mxu0 0.0
    %208 = vmatprep.subr.mxu0 0.0
    %209 = vmatpush2.xpose.msra.mxu0 0.0
    %210 = vmatprep.subr.mxu0 0.0
    %211 = vmatpush2.xpose.msra.mxu0 0.0
    %212 = vmatprep.subr.mxu0 0.0
    %213 = vmatpush2.xpose.msra.mxu0 0.0
    %214 = vmatprep.subr.mxu0 0.0
    %215 = vmatpush2.xpose.msra.mxu0 0.0
    %216 = vmatprep.subr.mxu0 0.0
    %217 = vmatpush2.xpose.msra.mxu0 0.0
    %218 = vmatprep.subr.mxu0 0.0
    %219 = vmatpush2.xpose.msra.mxu0 0.0
    %220 = vmatprep.subr.mxu0 0.0
    %221 = vmatpush2.xpose.msra.mxu0 0.0
    %222 = vmatprep.subr.mxu0 0.0
    %223 = vmatpush2.xpose.msra.mxu0 0.0
    %224 = vmatprep.subr.mxu0 0.0
    %225 = vmatpush2.xpose.msra.mxu0 0.0
    %226 = vmatprep.subr.mxu0 0.0
    %227 = vmatpush2.xpose.msra.mxu0 0.0
    %228 = vmatprep.subr.mxu0 0.0
    %229 = vmatpush2.xpose.msra.mxu0 0.0
    %230 = vmatprep.subr.mxu0 0.0
    %231 = vmatpush2.xpose.msra.mxu0 0.0
    %232 = vmatprep.subr.mxu0 0.0
    %233 = vmatpush2.xpose.msra.mxu0 0.0
    %234 = vmatprep.subr.mxu0 0.0
    %235 = vmatpush2.xpose.msra.mxu0 0.0
    %236 = vmatprep.mubr.f32.mxu0 0.0
    %237 = vmatmul.mubr.f32.gmra.mxu0 %v79
    %v238 = vpop.f32.mrf.mxu0
    %v239 = vadd.f32 %v164, %v238
    %v240 = vpop.f32.mrf.mxu0
    %241 = vdwg.mxu0
    %v242 = vmul.f32 %v239, 0.5
    %v243 = vmul.f32 %v242, 1.442695
    %v244 = vpow.pop %v243
    %v245 = vld [vmem:[%s5] sm:$0x3]
    %v246 = vmul.f32 %v245, %v244
    %v247 = vadd.f32 %v154, %v246
    %vm248 = vcmask 123904
    %249 = vst.msk [vmem:[#allocation8] sm:$0x3] %vm248, %v247
    %250 = vst.msk [vmem:[#allocation9] sm:$0x3] %vm248, %v154
    %251 = vst.msk [vmem:[#allocation11] sm:$0x3] %vm248, %v239
    // Predicated region
    $region38: #{tpu_custom_call.1} parent=1 // pred_check
      _
    $region39: #{tpu_custom_call.1} parent=1 // pred_check_branch
      %253 = sbr.rel (0) target = $region41
    $region40: #{tpu_custom_call.1} parent=1 // pred_region
      %s255 = ssub.s32 32, 32
      %256 = vsyncadd [#allocation4], %s255
      %s258 = sshll.u32 [#allocation8], 4
      %s259 = int_to_ptr.vmem [resolvable:$true] %s258
      %261 = dma.vmem_to_hbm [thread:$0]  %s259, 32, %s6, [#allocation4]
    $region41: #{tpu_custom_call.1} parent=1 // pred_fallthru
      _
    // Predicated region
    $region42: #{tpu_custom_call.1} parent=1 // pred_check
      _
    $region43: #{tpu_custom_call.1} parent=1 // pred_check_branch
      %263 = sbr.rel (0) target = $region45
    $region44: #{tpu_custom_call.1} parent=1 // pred_region
      %s265 = ssub.s32 32, 32
      %266 = vsyncadd [#allocation10], %s265
      %s268 = sshll.u32 [#allocation9], 4
      %s269 = int_to_ptr.vmem [resolvable:$true] %s268
      %271 = dma.vmem_to_hbm [thread:$0]  %s269, 32, %s7, [#allocation10]
    $region45: #{tpu_custom_call.1} parent=1 // pred_fallthru
      _
    // Predicated region
    $region46: #{tpu_custom_call.1} parent=1 // pred_check
      _
    $region47: #{tpu_custom_call.1} parent=1 // pred_check_branch
      %273 = sbr.rel (0) target = $region49
    $region48: #{tpu_custom_call.1} parent=1 // pred_region
      %s275 = ssub.s32 32, 32
      %276 = vsyncadd [#allocation10], %s275
      %s278 = sshll.u32 [#allocation11], 4
      %s279 = int_to_ptr.vmem [resolvable:$true] %s278
      %281 = dma.vmem_to_hbm [thread:$0]  %s279, 32, %s8, [#allocation10]
    $region49: #{tpu_custom_call.1} parent=1 // pred_fallthru
      _
    // Predicated region
    $region50: #{tpu_custom_call.1} parent=1 // pred_check
      _
    $region51: #{tpu_custom_call.1} parent=1 // pred_check_branch
      %283 = sbr.rel (0) target = $region53
    $region52: #{tpu_custom_call.1} parent=1 // pred_region
      %284 = dma.done [#allocation4], 32
    $region53: #{tpu_custom_call.1} parent=1 // pred_fallthru
      _
    // Predicated region
    $region54: #{tpu_custom_call.1} parent=1 // pred_check
      _
    $region55: #{tpu_custom_call.1} parent=1 // pred_check_branch
      %286 = sbr.rel (0) target = $region57
    $region56: #{tpu_custom_call.1} parent=1 // pred_region
      %287 = dma.done [#allocation10], 32
    $region57: #{tpu_custom_call.1} parent=1 // pred_fallthru
      _
    // Predicated region
    $region58: #{tpu_custom_call.1} parent=1 // pred_check
      _
    $region59: #{tpu_custom_call.1} parent=1 // pred_check_branch
      %289 = sbr.rel (0) target = $region61
    $region60: #{tpu_custom_call.1} parent=1 // pred_region
      %290 = dma.done [#allocation10], 32
    $region61: #{tpu_custom_call.1} parent=1 // pred_fallthru
      _
    %291 = vsyncpa [#allocation3], 1
    %292 = vsyncpa [#allocation6], 1
    %293 = vsyncpa [#allocation4], 1
    %294 = vsyncpa [#allocation10], 1

</llo_original>
